<compile_context>
chip_gen: v6e
topology: v6e:2x2x1
jax: 0.10.0
libtpu: 0.0.40
codegen_flags: <defaults>
</compile_context>

<pallas_src>
import functools

import jax
import jax.numpy as jnp
from jax.experimental import pallas as pl
from jax.experimental.pallas import tpu as pltpu


def attention_mlp_kernel(x_ref, ws_ref, bs_ref, w2_ref, b2_ref, o_ref, *, eps):
    x = x_ref[...]                                                # (tm, d_in) f32

    # Fused fc1 + (seq_len==1) self-attention + residual (pre-folded): s = x@w_s + b_s
    s = jnp.dot(x, ws_ref[...], preferred_element_type=jnp.float32) + bs_ref[...]

    # LayerNorm (affine folded into fc2); stats in f32, rsqrt goes to the EUP.
    mean = jnp.mean(s, axis=-1, keepdims=True)
    var = jnp.mean(jnp.square(s - mean), axis=-1, keepdims=True)
    y = (s - mean) * jax.lax.rsqrt(var + eps)

    # fc2 (gamma folded into w2', beta@w2+b2 folded into b2'), lane-dense output.
    o_ref[...] = jnp.dot(y, w2_ref[...], preferred_element_type=jnp.float32) + b2_ref[...]


def _round_up(a, b):
    return -(-a // b) * b


def _num_tensorcores():
    """TensorCores per chip: v7x has 2 (megacore grid sharding); v5e/v6e have 1."""
    try:
        info = pltpu.get_tpu_info()
        for name in ("num_cores", "tensorcore_count", "num_tensorcores", "cores_per_chip"):
            v = getattr(info, name, None)
            if isinstance(v, int) and v > 0:
                return v
    except Exception:
        pass
    try:
        kind = jax.devices()[0].device_kind.lower()
        if "v7" in kind or "7x" in kind:
            return 2
    except Exception:
        pass
    return 1


def attention_mlp_pallas(x, params, *, tm=2048, eps=1e-5):
    """x: (..., input_dim). Returns (N, output_dim), N = prod(x.shape[:-1])."""
    (w1, b1, wq, bq, wk, bk, wv, bv, wo, bo, gamma, beta, w2, b2) = params
    del wq, bq, wk, bk  # dead for seq_len == 1 (softmax over a single key == 1)

    d_in = x.shape[-1]
    x2 = x.reshape(-1, d_in).astype(jnp.float32)   # same as torch reshape(-1, last)
    n = x2.shape[0]
    hidden = w1.shape[1]
    d_out = w2.shape[1]

    # ---- one-time wrapper-side weight folding (O(H^2) JAX ops) ------------
    #   attn_out = h @ (wv@wo) + (bv@wo + bo)
    #   s = h + attn_out = x @ (w1 @ (I + wv@wo)) + (b1 @ (I + wv@wo) + bv@wo + bo)
    m = jnp.eye(hidden, dtype=jnp.float32) + wv @ wo
    w_s = (w1 @ m).astype(jnp.float32)                          # (d_in, H)
    b_s = (b1 @ m + bv @ wo + bo).astype(jnp.float32)           # (1, H)

    #   LN affine folded into fc2:  y_ln @ w2 + b2 = y_norm @ (diag(gamma)@w2) + (beta@w2 + b2)
    w2f = (gamma.reshape(hidden, 1) * w2).astype(jnp.float32)   # (H, d_out)
    b2f = (beta @ w2 + b2).astype(jnp.float32)                  # (1, d_out)

    #   Lane-dense output: pad fc2 output columns to a multiple of 128.
    d_out_pad = _round_up(d_out, 128)
    w2p = jnp.pad(w2f, ((0, 0), (0, d_out_pad - d_out)))
    b2p = jnp.pad(b2f, ((0, 0), (0, d_out_pad - d_out)))

    # ---- row tiling: big balanced tiles; split only for multi-TC chips ----
    num_tc = _num_tensorcores()
    steps = max(pl.cdiv(n, tm), num_tc)
    tm_eff = max(8, _round_up(pl.cdiv(n, steps), 8))
    n_pad = _round_up(n, tm_eff)
    if n_pad != n:
        x2 = jnp.pad(x2, ((0, n_pad - n), (0, 0)))              # pad rows, sliced off below
    grid = (n_pad // tm_eff,)

    def const_spec(a):
        # whole operand, constant block index -> stays resident across the grid
        return pl.BlockSpec(a.shape, lambda i: (0,) * a.ndim)

    kernel = functools.partial(attention_mlp_kernel, eps=eps)

    flops = 2 * n_pad * (d_in * hidden + hidden * d_out_pad) + 8 * n_pad * hidden
    bytes_accessed = 4 * (n_pad * (d_in + d_out_pad)
                          + d_in * hidden + hidden * d_out_pad + 2 * hidden + d_out_pad)

    out = pl.pallas_call(
        kernel,
        out_shape=jax.ShapeDtypeStruct((n_pad, d_out_pad), jnp.float32),
        grid=grid,
        in_specs=[pl.BlockSpec((tm_eff, d_in), lambda i: (i, 0))] +
                 [const_spec(a) for a in (w_s, b_s, w2p, b2p)],
        out_specs=pl.BlockSpec((tm_eff, d_out_pad), lambda i: (i, 0)),
        compiler_params=pltpu.CompilerParams(
            dimension_semantics=("parallel",),
            vmem_limit_bytes=48 * 1024 * 1024,   # headroom vs v7x's 64 MiB VMEM
        ),
        cost_estimate=pl.CostEstimate(flops=flops,
                                      transcendentals=n_pad,
                                      bytes_accessed=bytes_accessed),
    )(x2, w_s, b_s, w2p, b2p)
    return out[:n, :d_out]


def init_params(key, input_dim, hidden_dim, output_dim):
    """Deterministic synthetic parameters, stored kernel-ready:
       weights (in, out), biases (1, out)."""
    ks = jax.random.split(key, 10)
    f32 = jnp.float32

    def w(k, shape):
        return (0.1 * jax.random.normal(k, shape)).astype(f32)

    w1 = w(ks[0], (input_dim, hidden_dim))
    b1 = w(ks[1], (1, hidden_dim))
    # MultiheadAttention in_proj (q|k|v) and out_proj
    wq = w(ks[2], (hidden_dim, hidden_dim))
    wk = w(ks[3], (hidden_dim, hidden_dim))
    wv = w(ks[4], (hidden_dim, hidden_dim))
    bq = jnp.zeros((1, hidden_dim), f32)
    bk = jnp.zeros((1, hidden_dim), f32)
    bv = w(ks[5], (1, hidden_dim))
    wo = w(ks[6], (hidden_dim, hidden_dim))
    bo = w(ks[7], (1, hidden_dim))
    # LayerNorm affine
    gamma = (1.0 + 0.05 * jax.random.normal(ks[8], (1, hidden_dim))).astype(f32)
    beta = (0.05 * jax.random.normal(ks[9], (1, hidden_dim))).astype(f32)
    # fc2
    w2 = w(jax.random.fold_in(key, 100), (hidden_dim, output_dim))
    b2 = w(jax.random.fold_in(key, 101), (1, output_dim))
    return (w1, b1, wq, bq, wk, bk, wv, bv, wo, bo, gamma, beta, w2, b2)


def attention_mlp_reference(x, params, eps=1e-5):
    """Un-folded JAX reference matching the PyTorch module exactly."""
    (w1, b1, wq, bq, wk, bk, wv, bv, wo, bo, gamma, beta, w2, b2) = params
    x2 = x.reshape(-1, x.shape[-1])
    h = x2 @ w1 + b1
    v = h @ wv + bv                       # softmax over the single key == 1
    attn_out = v @ wo + bo
    s = h + attn_out
    mean = jnp.mean(s, axis=-1, keepdims=True)
    var = jnp.mean(jnp.square(s - mean), axis=-1, keepdims=True)
    y = (s - mean) / jnp.sqrt(var + eps) * gamma + beta
    return y @ w2 + b2


if __name__ == "__main__":
    input_dim, hidden_dim, output_dim = 16, 32, 8
    key = jax.random.PRNGKey(0)
    k_x, k_x2, k_p = jax.random.split(key, 3)
    params = init_params(k_p, input_dim, hidden_dim, output_dim)

    # Primary case: (2, 4, 16, 16) -> flattened to (128, 16).
    x = jax.random.normal(k_x, (2, 4, 16, input_dim), dtype=jnp.float32)
    out = jax.block_until_ready(attention_mlp_pallas(x, params))
    ref = attention_mlp_reference(x, params)
    assert out.shape == (128, output_dim)
    assert jnp.allclose(out, ref, atol=1e-4, rtol=1e-4), "mismatch vs JAX reference"

    # Ragged case: N = 15 (not a multiple of 8) exercises the row-pad path.
    x_r = jax.random.normal(k_x2, (3, 5, input_dim), dtype=jnp.float32)
    out_r = jax.block_until_ready(attention_mlp_pallas(x_r, params))
    ref_r = attention_mlp_reference(x_r, params)
    assert out_r.shape == (15, output_dim)
    assert jnp.allclose(out_r, ref_r, atol=1e-4, rtol=1e-4), "mismatch (ragged)"

    # Multi-step grid path (forced small tile) so the grid loop is exercised
    # on every chip generation, not just multi-TC ones.
    out_g = jax.block_until_ready(attention_mlp_pallas(x, params, tm=64))
    assert jnp.allclose(out_g, ref, atol=1e-4, rtol=1e-4), "mismatch (multi-step grid)"

    print("KERNEL_OK")
</pallas_src>

<mosaic_0001>
module attributes {stable_mosaic.version = 11 : i64} {
  func.func @attention_mlp_kernel(%arg0: i32, %arg1: memref<128x16xf32, #tpu.memory_space<vmem>>, %arg2: memref<16x32xf32, #tpu.memory_space<vmem>>, %arg3: memref<1x32xf32, #tpu.memory_space<vmem>>, %arg4: memref<32x128xf32, #tpu.memory_space<vmem>>, %arg5: memref<1x128xf32, #tpu.memory_space<vmem>>, %arg6: memref<128x128xf32, #tpu.memory_space<vmem>>) attributes {dimension_semantics = [#tpu.dimension_semantics<parallel>], iteration_bounds = array<i64: 1>, scalar_prefetch = 0 : i64, scratch_operands = 0 : i64, tpu.core_type = #tpu.core_type<tc>, window_params = [{transform_indices = @transform_0, window_bounds = array<i64: 128, 16>}, {pipeline_mode = #tpu.pipeline_mode<synchronous>, transform_indices = @transform_1, window_bounds = array<i64: 16, 32>}, {pipeline_mode = #tpu.pipeline_mode<synchronous>, transform_indices = @transform_2, window_bounds = array<i64: 1, 32>}, {pipeline_mode = #tpu.pipeline_mode<synchronous>, transform_indices = @transform_3, window_bounds = array<i64: 32, 128>}, {pipeline_mode = #tpu.pipeline_mode<synchronous>, transform_indices = @transform_4, window_bounds = array<i64: 1, 128>}, {transform_indices = @transform_5, window_bounds = array<i64: 128, 128>}]} {
    %c0 = arith.constant 0 : index
    %c0_0 = arith.constant 0 : index
    %0 = vector.load %arg1[%c0, %c0_0] : memref<128x16xf32, #tpu.memory_space<vmem>>, vector<128x16xf32>
    %c0_1 = arith.constant 0 : index
    %c0_2 = arith.constant 0 : index
    %1 = vector.load %arg2[%c0_1, %c0_2] : memref<16x32xf32, #tpu.memory_space<vmem>>, vector<16x32xf32>
    %cst = arith.constant dense<0.000000e+00> : vector<128x32xf32>
    %2 = tpu.matmul %0, %1, %cst {dimension_numbers = #tpu.dot_dimension_numbers<[1], [0], [0], [1], [0, 0, 1, 1], [], []>} : vector<128x16xf32>, vector<16x32xf32>, vector<128x32xf32> -> vector<128x32xf32>
    %c0_3 = arith.constant 0 : index
    %c0_4 = arith.constant 0 : index
    %3 = vector.load %arg3[%c0_3, %c0_4] : memref<1x32xf32, #tpu.memory_space<vmem>>, vector<1x32xf32>
    %4 = vector.broadcast %3 : vector<1x32xf32> to vector<128x32xf32>
    %5 = arith.addf %2, %4 : vector<128x32xf32>
    %cst_5 = arith.constant dense<0.000000e+00> : vector<128xf32>
    %6 = vector.multi_reduction <add>, %5, %cst_5 [1] : vector<128x32xf32> to vector<128xf32>
    %7 = vector.shape_cast %6 : vector<128xf32> to vector<128x1xf32>
    %cst_6 = arith.constant 3.200000e+01 : f32
    %8 = vector.broadcast %cst_6 : f32 to vector<128x1xf32>
    %9 = arith.divf %7, %8 : vector<128x1xf32>
    %10 = vector.broadcast %9 : vector<128x1xf32> to vector<128x32xf32>
    %11 = arith.subf %5, %10 : vector<128x32xf32>
    %12 = arith.mulf %11, %11 : vector<128x32xf32>
    %cst_7 = arith.constant dense<0.000000e+00> : vector<128xf32>
    %13 = vector.multi_reduction <add>, %12, %cst_7 [1] : vector<128x32xf32> to vector<128xf32>
    %14 = vector.shape_cast %13 : vector<128xf32> to vector<128x1xf32>
    %cst_8 = arith.constant 3.200000e+01 : f32
    %15 = vector.broadcast %cst_8 : f32 to vector<128x1xf32>
    %16 = arith.divf %14, %15 : vector<128x1xf32>
    %17 = vector.broadcast %9 : vector<128x1xf32> to vector<128x32xf32>
    %18 = arith.subf %5, %17 : vector<128x32xf32>
    %cst_9 = arith.constant 9.99999974E-6 : f32
    %19 = vector.broadcast %cst_9 : f32 to vector<128x1xf32>
    %20 = arith.addf %16, %19 : vector<128x1xf32>
    %21 = math.rsqrt %20 : vector<128x1xf32>
    %22 = vector.broadcast %21 : vector<128x1xf32> to vector<128x32xf32>
    %23 = arith.mulf %18, %22 : vector<128x32xf32>
    %c0_10 = arith.constant 0 : index
    %c0_11 = arith.constant 0 : index
    %24 = vector.load %arg4[%c0_10, %c0_11] : memref<32x128xf32, #tpu.memory_space<vmem>>, vector<32x128xf32>
    %cst_12 = arith.constant dense<0.000000e+00> : vector<128x128xf32>
    %25 = tpu.matmul %23, %24, %cst_12 {dimension_numbers = #tpu.dot_dimension_numbers<[1], [0], [0], [1], [0, 0, 1, 1], [], []>} : vector<128x32xf32>, vector<32x128xf32>, vector<128x128xf32> -> vector<128x128xf32>
    %c0_13 = arith.constant 0 : index
    %c0_14 = arith.constant 0 : index
    %26 = vector.load %arg5[%c0_13, %c0_14] : memref<1x128xf32, #tpu.memory_space<vmem>>, vector<1x128xf32>
    %27 = vector.broadcast %26 : vector<1x128xf32> to vector<128x128xf32>
    %28 = arith.addf %25, %27 : vector<128x128xf32>
    %c0_15 = arith.constant 0 : index
    %c0_16 = arith.constant 0 : index
    %29 = vector.load %arg6[%c0_15, %c0_16] : memref<128x128xf32, #tpu.memory_space<vmem>>, vector<128x128xf32>
    tpu.vector_store %arg6[%c0_15, %c0_16], %28 {strides = array<i32>} : memref<128x128xf32, #tpu.memory_space<vmem>>, vector<128x128xf32>,
    return
  }
  func.func @transform_0(%arg0: i32) -> (i32, i32) {
    %c0_i32 = arith.constant 0 : i32
    %c0_i32_0 = arith.constant 0 : i32
    return %arg0, %c0_i32 : i32, i32
  }
  func.func @transform_1(%arg0: i32) -> (i32, i32) {
    %c0_i32 = arith.constant 0 : i32
    %c0_i32_0 = arith.constant 0 : i32
    %c0_i32_1 = arith.constant 0 : i32
    return %c0_i32, %c0_i32_0 : i32, i32
  }
  func.func @transform_2(%arg0: i32) -> (i32, i32) {
    %c0_i32 = arith.constant 0 : i32
    %c0_i32_0 = arith.constant 0 : i32
    %c0_i32_1 = arith.constant 0 : i32
    return %c0_i32, %c0_i32_0 : i32, i32
  }
  func.func @transform_3(%arg0: i32) -> (i32, i32) {
    %c0_i32 = arith.constant 0 : i32
    %c0_i32_0 = arith.constant 0 : i32
    %c0_i32_1 = arith.constant 0 : i32
    return %c0_i32, %c0_i32_0 : i32, i32
  }
  func.func @transform_4(%arg0: i32) -> (i32, i32) {
    %c0_i32 = arith.constant 0 : i32
    %c0_i32_0 = arith.constant 0 : i32
    %c0_i32_1 = arith.constant 0 : i32
    return %c0_i32, %c0_i32_0 : i32, i32
  }
  func.func @transform_5(%arg0: i32) -> (i32, i32) {
    %c0_i32 = arith.constant 0 : i32
    %c0_i32_0 = arith.constant 0 : i32
    return %arg0, %c0_i32 : i32, i32
  }
}

</mosaic_0001>

<llo_original>
// kernel: tpu_custom_call.1
$region0: #{tpu_custom_call.1}
  #allocation0 [shape = 'u32[]', space=smem, size = 0x4, offset = 0x4, fixed_abs, tag = 'smem constant byte address 0x4 - core index']
  #allocation1 [shape = 'u32[144,128]{1,0:T(1,128)}', space=vmem, size = 0x12000, scoped, tag = 'internal scratch']
  %s0 = inlined_call_operand.vmem [shape: f32[128,16], index: 0, kind: input, shape index: {}]
  %s1 = inlined_call_operand.vmem [shape: f32[16,32], index: 1, kind: input, shape index: {}]
  %s2 = inlined_call_operand.vmem [shape: f32[1,32], index: 2, kind: input, shape index: {}]
  %s3 = inlined_call_operand.vmem [shape: f32[32,128], index: 3, kind: input, shape index: {}]
  %s4 = inlined_call_operand.vmem [shape: f32[1,128], index: 4, kind: input, shape index: {}]
  %s5 = inlined_call_operand.hbm [shape: f32[128,128], index: 5, kind: output, shape index: {}]
  %s6 = sld [smem:[#allocation0]]
  $region30: #{tpu_custom_call.1} parent=0
    _
  %s8 = ssub.s32 1, %s6
  %s9 = scalar_select 0, %s8, %s6
  $region1: #{tpu_custom_call.1} parent=0
    #allocation2 [shape = 'u8[65536]{0}', space=vmem, size = 0x10000, scoped, tag = 'output window, operand 0, single buffered']
    #allocation3 [shape = 's32[1]{0}', space=sflag, size = 0x4, scoped, tag = 'scoped memory for tpu_custom_call.1']
    %10 = vsyncpa [#allocation3], 0
    // Predicated region
    $region2: #{tpu_custom_call.1} parent=1 // pred_check
      _
    $region3: #{tpu_custom_call.1} parent=1 // pred_check_branch
      %12 = sbr.rel (0) target = $region5
    $region4: #{tpu_custom_call.1} parent=1 // pred_region
      _
    $region5: #{tpu_custom_call.1} parent=1 // pred_fallthru
      _
    // Predicated region
    $region6: #{tpu_custom_call.1} parent=1 // pred_check
      _
    $region7: #{tpu_custom_call.1} parent=1 // pred_check_branch
      %14 = sbr.rel (0) target = $region9
    $region8: #{tpu_custom_call.1} parent=1 // pred_region
      _
    $region9: #{tpu_custom_call.1} parent=1 // pred_fallthru
      _
    // Predicated region
    $region10: #{tpu_custom_call.1} parent=1 // pred_check
      _
    $region11: #{tpu_custom_call.1} parent=1 // pred_check_branch
      %16 = sbr.rel (0) target = $region13
    $region12: #{tpu_custom_call.1} parent=1 // pred_region
      _
    $region13: #{tpu_custom_call.1} parent=1 // pred_fallthru
      _
    // Predicated region
    $region14: #{tpu_custom_call.1} parent=1 // pred_check
      _
    $region15: #{tpu_custom_call.1} parent=1 // pred_check_branch
      %18 = sbr.rel (0) target = $region17
    $region16: #{tpu_custom_call.1} parent=1 // pred_region
      _
    $region17: #{tpu_custom_call.1} parent=1 // pred_fallthru
      _
    // Predicated region
    $region18: #{tpu_custom_call.1} parent=1 // pred_check
      _
    $region19: #{tpu_custom_call.1} parent=1 // pred_check_branch
      %20 = sbr.rel (0) target = $region21
    $region20: #{tpu_custom_call.1} parent=1 // pred_region
      _
    $region21: #{tpu_custom_call.1} parent=1 // pred_fallthru
      _
    %v21 = vld [vmem:[%s0] sm:$0xff]
    %v22 = vld [vmem:[%s0 + $0x8] sm:$0xff]
    %v23 = vld [vmem:[%s0 + $0x10] sm:$0xff]
    %v24 = vld [vmem:[%s0 + $0x18] sm:$0xff]
    %v25 = vld [vmem:[%s0 + $0x20] sm:$0xff]
    %v26 = vld [vmem:[%s0 + $0x28] sm:$0xff]
    %v27 = vld [vmem:[%s0 + $0x30] sm:$0xff]
    %v28 = vld [vmem:[%s0 + $0x38] sm:$0xff]
    %v29 = vld [vmem:[%s0 + $0x40] sm:$0xff]
    %v30 = vld [vmem:[%s0 + $0x48] sm:$0xff]
    %v31 = vld [vmem:[%s0 + $0x50] sm:$0xff]
    %v32 = vld [vmem:[%s0 + $0x58] sm:$0xff]
    %v33 = vld [vmem:[%s0 + $0x60] sm:$0xff]
    %v34 = vld [vmem:[%s0 + $0x68] sm:$0xff]
    %v35 = vld [vmem:[%s0 + $0x70] sm:$0xff]
    %v36 = vld [vmem:[%s0 + $0x78] sm:$0xff]
    %v37 = vld [vmem:[%s1] sm:$0xff]
    %v38 = vld [vmem:[%s1 + $0x8] sm:$0xff]
    %v39 = vld [vmem:[%s2] sm:$0x1]
    %v41 = vlaneseq
    %v42 = vshrl.u32 %v41, 7
    %v43 = vsub.s32 0, %v42
    %v44 = vrot.slane %v39, %v43
    %vm46 = vcmask 130048
    %v48 = vsel %vm46, %v21, 0
    %v51 = vsel %vm46, %v22, 0
    %v54 = vsel %vm46, %v23, 0
    %v57 = vsel %vm46, %v24, 0
    %v60 = vsel %vm46, %v25, 0
    %v63 = vsel %vm46, %v26, 0
    %v66 = vsel %vm46, %v27, 0
    %v69 = vsel %vm46, %v28, 0
    %v72 = vsel %vm46, %v29, 0
    %v75 = vsel %vm46, %v30, 0
    %v78 = vsel %vm46, %v31, 0
    %v81 = vsel %vm46, %v32, 0
    %v84 = vsel %vm46, %v33, 0
    %v87 = vsel %vm46, %v34, 0
    %v90 = vsel %vm46, %v35, 0
    %v93 = vsel %vm46, %v36, 0
    %95 = vmatprep.subr.mxu0 0.0
    %96 = vmatpush1.msra.mxu0 0.0
    %97 = vmatprep.subr.mxu0 0.0
    %98 = vmatpush1.msra.mxu0 0.0
    %99 = vmatprep.subr.mxu0 0.0
    %100 = vmatpush1.msra.mxu0 0.0
    %101 = vmatprep.subr.mxu0 0.0
    %102 = vmatpush1.msra.mxu0 0.0
    %103 = vmatprep.subr.mxu0 0.0
    %104 = vmatpush1.msra.mxu0 0.0
    %105 = vmatprep.subr.mxu0 0.0
    %106 = vmatpush1.msra.mxu0 0.0
    %107 = vmatprep.subr.mxu0 0.0
    %108 = vmatpush1.msra.mxu0 0.0
    %109 = vmatprep.subr.mxu0 0.0
    %110 = vmatpush1.msra.mxu0 0.0
    %111 = vmatprep.subr.mxu0 0.0
    %112 = vmatpush1.msra.mxu0 0.0
    %113 = vmatprep.subr.mxu0 0.0
    %114 = vmatpush1.msra.mxu0 0.0
    %115 = vmatprep.subr.mxu0 0.0
    %116 = vmatpush1.msra.mxu0 0.0
    %117 = vmatprep.subr.mxu0 0.0
    %118 = vmatpush1.msra.mxu0 0.0
    %119 = vmatprep.subr.mxu0 0.0
    %120 = vmatpush1.msra.mxu0 0.0
    %121 = vmatprep.subr.mxu0 0.0
    %122 = vmatpush1.msra.mxu0 0.0
    %123 = vmatprep.subr.mxu0 0.0
    %124 = vmatpush1.msra.mxu0 %v38
    %125 = vmatprep.subr.mxu0 0.0
    %126 = vmatpush1.msra.mxu0 %v37
    %127 = vmatprep.subr.mxu0 0.0
    %128 = vmatpush2.msra.mxu0 0.0
    %129 = vmatprep.subr.mxu0 0.0
    %130 = vmatpush2.msra.mxu0 0.0
    %131 = vmatprep.subr.mxu0 0.0
    %132 = vmatpush2.msra.mxu0 0.0
    %133 = vmatprep.subr.mxu0 0.0
    %134 = vmatpush2.msra.mxu0 0.0
    %135 = vmatprep.subr.mxu0 0.0
    %136 = vmatpush2.msra.mxu0 0.0
    %137 = vmatprep.subr.mxu0 0.0
    %138 = vmatpush2.msra.mxu0 0.0
    %139 = vmatprep.subr.mxu0 0.0
    %140 = vmatpush2.msra.mxu0 0.0
    %141 = vmatprep.subr.mxu0 0.0
    %142 = vmatpush2.msra.mxu0 0.0
    %143 = vmatprep.subr.mxu0 0.0
    %144 = vmatpush2.msra.mxu0 0.0
    %145 = vmatprep.subr.mxu0 0.0
    %146 = vmatpush2.msra.mxu0 0.0
    %147 = vmatprep.subr.mxu0 0.0
    %148 = vmatpush2.msra.mxu0 0.0
    %149 = vmatprep.subr.mxu0 0.0
    %150 = vmatpush2.msra.mxu0 0.0
    %151 = vmatprep.subr.mxu0 0.0
    %152 = vmatpush2.msra.mxu0 0.0
    %153 = vmatprep.subr.mxu0 0.0
    %154 = vmatpush2.msra.mxu0 0.0
    %155 = vmatprep.subr.mxu0 0.0
    %156 = vmatpush2.msra.mxu0 0.0
    %157 = vmatprep.subr.mxu0 0.0
    %158 = vmatpush2.msra.mxu0 0.0
    %159 = vmatprep.mubr.f32.mxu0 0.0
    %160 = vmatmul.mubr.f32.gmra.mxu0 %v48
    %v161 = vpop.f32.mrf.mxu0
    %v162 = vadd.f32 %v44, %v161
    %v163 = vpop.f32.mrf.mxu0
    %164 = vmatprep.mubr.f32.mxu0 0.0
    %165 = vmatmul.mubr.f32.gmra.mxu0 %v51
    %v166 = vpop.f32.mrf.mxu0
    %v167 = vadd.f32 %v44, %v166
    %v168 = vpop.f32.mrf.mxu0
    %169 = vmatprep.mubr.f32.mxu0 0.0
    %170 = vmatmul.mubr.f32.gmra.mxu0 %v54
    %v171 = vpop.f32.mrf.mxu0
    %v172 = vadd.f32 %v44, %v171
    %v173 = vpop.f32.mrf.mxu0
    %174 = vmatprep.mubr.f32.mxu0 0.0
    %175 = vmatmul.mubr.f32.gmra.mxu0 %v57
    %v176 = vpop.f32.mrf.mxu0
    %v177 = vadd.f32 %v44, %v176
    %v178 = vpop.f32.mrf.mxu0
    %179 = vmatprep.mubr.f32.mxu0 0.0
    %180 = vmatmul.mubr.f32.gmra.mxu0 %v60
    %v181 = vpop.f32.mrf.mxu0
    %v182 = vadd.f32 %v44, %v181
    %v183 = vpop.f32.mrf.mxu0
    %184 = vmatprep.mubr.f32.mxu0 0.0
    %185 = vmatmul.mubr.f32.gmra.mxu0 %v63
    %v186 = vpop.f32.mrf.mxu0
    %v187 = vadd.f32 %v44, %v186
    %v188 = vpop.f32.mrf.mxu0
    %189 = vmatprep.mubr.f32.mxu0 0.0
    %190 = vmatmul.mubr.f32.gmra.mxu0 %v66
    %v191 = vpop.f32.mrf.mxu0
    %v192 = vadd.f32 %v44, %v191
    %v193 = vpop.f32.mrf.mxu0
    %194 = vmatprep.mubr.f32.mxu0 0.0
    %195 = vmatmul.mubr.f32.gmra.mxu0 %v69
    %v196 = vpop.f32.mrf.mxu0
    %v197 = vadd.f32 %v44, %v196
    %v198 = vpop.f32.mrf.mxu0
    %199 = vmatprep.mubr.f32.mxu0 0.0
    %200 = vmatmul.mubr.f32.gmra.mxu0 %v72
    %v201 = vpop.f32.mrf.mxu0
    %v202 = vadd.f32 %v44, %v201
    %v203 = vpop.f32.mrf.mxu0
    %204 = vmatprep.mubr.f32.mxu0 0.0
    %205 = vmatmul.mubr.f32.gmra.mxu0 %v75
    %v206 = vpop.f32.mrf.mxu0
    %v207 = vadd.f32 %v44, %v206
    %v208 = vpop.f32.mrf.mxu0
    %209 = vmatprep.mubr.f32.mxu0 0.0
    %210 = vmatmul.mubr.f32.gmra.mxu0 %v78
    %v211 = vpop.f32.mrf.mxu0
    %v212 = vadd.f32 %v44, %v211
    %v213 = vpop.f32.mrf.mxu0
    %214 = vmatprep.mubr.f32.mxu0 0.0
    %215 = vmatmul.mubr.f32.gmra.mxu0 %v81
    %v216 = vpop.f32.mrf.mxu0
    %v217 = vadd.f32 %v44, %v216
    %v218 = vpop.f32.mrf.mxu0
    %219 = vmatprep.mubr.f32.mxu0 0.0
    %220 = vmatmul.mubr.f32.gmra.mxu0 %v84
    %v221 = vpop.f32.mrf.mxu0
    %v222 = vadd.f32 %v44, %v221
    %v223 = vpop.f32.mrf.mxu0
    %224 = vmatprep.mubr.f32.mxu0 0.0
    %225 = vmatmul.mubr.f32.gmra.mxu0 %v87
    %v226 = vpop.f32.mrf.mxu0
    %v227 = vadd.f32 %v44, %v226
    %v228 = vpop.f32.mrf.mxu0
    %229 = vmatprep.mubr.f32.mxu0 0.0
    %230 = vmatmul.mubr.f32.gmra.mxu0 %v90
    %v231 = vpop.f32.mrf.mxu0
    %v232 = vadd.f32 %v44, %v231
    %v233 = vpop.f32.mrf.mxu0
    %234 = vmatprep.mubr.f32.mxu0 0.0
    %235 = vmatmul.mubr.f32.gmra.mxu0 %v93
    %v236 = vpop.f32.mrf.mxu0
    %v237 = vadd.f32 %v44, %v236
    %v238 = vpop.f32.mrf.mxu0
    %239 = vdwg.mxu0
    %vm240 = vcmask 261120
    %v241 = vsel %vm240, %v162, 0.0
    %242 = vadd.xlane.f32.xlu0 %v241
    %v243 = vpop.xlane.xlu0 %242
    %v244 = vsel %vm240, %v167, 0.0
    %245 = vadd.xlane.f32.xlu0 %v244
    %v246 = vpop.xlane.xlu0 %245
    %v247 = vsel %vm240, %v172, 0.0
    %248 = vadd.xlane.f32.xlu0 %v247
    %v249 = vpop.xlane.xlu0 %248
    %v250 = vsel %vm240, %v177, 0.0
    %251 = vadd.xlane.f32.xlu0 %v250
    %v252 = vpop.xlane.xlu0 %251
    %v253 = vsel %vm240, %v182, 0.0
    %254 = vadd.xlane.f32.xlu0 %v253
    %v255 = vpop.xlane.xlu0 %254
    %v256 = vsel %vm240, %v187, 0.0
    %257 = vadd.xlane.f32.xlu0 %v256
    %v258 = vpop.xlane.xlu0 %257
    %v259 = vsel %vm240, %v192, 0.0
    %260 = vadd.xlane.f32.xlu0 %v259
    %v261 = vpop.xlane.xlu0 %260
    %v262 = vsel %vm240, %v197, 0.0
    %263 = vadd.xlane.f32.xlu0 %v262
    %v264 = vpop.xlane.xlu0 %263
    %v265 = vsel %vm240, %v202, 0.0
    %266 = vadd.xlane.f32.xlu0 %v265
    %v267 = vpop.xlane.xlu0 %266
    %v268 = vsel %vm240, %v207, 0.0
    %269 = vadd.xlane.f32.xlu0 %v268
    %v270 = vpop.xlane.xlu0 %269
    %v271 = vsel %vm240, %v212, 0.0
    %272 = vadd.xlane.f32.xlu0 %v271
    %v273 = vpop.xlane.xlu0 %272
    %v274 = vsel %vm240, %v217, 0.0
    %275 = vadd.xlane.f32.xlu0 %v274
    %v276 = vpop.xlane.xlu0 %275
    %v277 = vsel %vm240, %v222, 0.0
    %278 = vadd.xlane.f32.xlu0 %v277
    %v279 = vpop.xlane.xlu0 %278
    %v280 = vsel %vm240, %v227, 0.0
    %281 = vadd.xlane.f32.xlu0 %v280
    %v282 = vpop.xlane.xlu0 %281
    %v283 = vsel %vm240, %v232, 0.0
    %284 = vadd.xlane.f32.xlu0 %v283
    %v285 = vpop.xlane.xlu0 %284
    %v286 = vsel %vm240, %v237, 0.0
    %287 = vadd.xlane.f32.xlu0 %v286
    %v288 = vpop.xlane.xlu0 %287
    %v289 = vrcp.pop 32.0
    %v290 = vmul.f32 %v243, %v289
    %v291 = vmul.f32 %v246, %v289
    %v292 = vmul.f32 %v249, %v289
    %v293 = vmul.f32 %v252, %v289
    %v294 = vmul.f32 %v255, %v289
    %v295 = vmul.f32 %v258, %v289
    %v296 = vmul.f32 %v261, %v289
    %v297 = vmul.f32 %v264, %v289
    %v298 = vmul.f32 %v267, %v289
    %v299 = vmul.f32 %v270, %v289
    %v300 = vmul.f32 %v273, %v289
    %v301 = vmul.f32 %v276, %v289
    %v302 = vmul.f32 %v279, %v289
    %v303 = vmul.f32 %v282, %v289
    %v304 = vmul.f32 %v285, %v289
    %v305 = vmul.f32 %v288, %v289
    %v306 = vsub.f32 %v162, %v290
    %v307 = vsub.f32 %v167, %v291
    %v308 = vsub.f32 %v172, %v292
    %v309 = vsub.f32 %v177, %v293
    %v310 = vsub.f32 %v182, %v294
    %v311 = vsub.f32 %v187, %v295
    %v312 = vsub.f32 %v192, %v296
    %v313 = vsub.f32 %v197, %v297
    %v314 = vsub.f32 %v202, %v298
    %v315 = vsub.f32 %v207, %v299
    %v316 = vsub.f32 %v212, %v300
    %v317 = vsub.f32 %v217, %v301
    %v318 = vsub.f32 %v222, %v302
    %v319 = vsub.f32 %v227, %v303
    %v320 = vsub.f32 %v232, %v304
    %v321 = vsub.f32 %v237, %v305
    %v322 = vmul.f32 %v306, %v306
    %v323 = vmul.f32 %v307, %v307
    %v324 = vmul.f32 %v308, %v308
    %v325 = vmul.f32 %v309, %v309
    %v326 = vmul.f32 %v310, %v310
    %v327 = vmul.f32 %v311, %v311
    %v328 = vmul.f32 %v312, %v312
    %v329 = vmul.f32 %v313, %v313
    %v330 = vmul.f32 %v314, %v314
    %v331 = vmul.f32 %v315, %v315
    %v332 = vmul.f32 %v316, %v316
    %v333 = vmul.f32 %v317, %v317
    %v334 = vmul.f32 %v318, %v318
    %v335 = vmul.f32 %v319, %v319
    %v336 = vmul.f32 %v320, %v320
    %v337 = vmul.f32 %v321, %v321
    %v338 = vsel %vm240, %v322, 0.0
    %339 = vadd.xlane.f32.xlu0 %v338
    %v340 = vpop.xlane.xlu0 %339
    %v341 = vsel %vm240, %v323, 0.0
    %342 = vadd.xlane.f32.xlu0 %v341
    %v343 = vpop.xlane.xlu0 %342
    %v344 = vsel %vm240, %v324, 0.0
    %345 = vadd.xlane.f32.xlu0 %v344
    %v346 = vpop.xlane.xlu0 %345
    %v347 = vsel %vm240, %v325, 0.0
    %348 = vadd.xlane.f32.xlu0 %v347
    %v349 = vpop.xlane.xlu0 %348
    %v350 = vsel %vm240, %v326, 0.0
    %351 = vadd.xlane.f32.xlu0 %v350
    %v352 = vpop.xlane.xlu0 %351
    %v353 = vsel %vm240, %v327, 0.0
    %354 = vadd.xlane.f32.xlu0 %v353
    %v355 = vpop.xlane.xlu0 %354
    %v356 = vsel %vm240, %v328, 0.0
    %357 = vadd.xlane.f32.xlu0 %v356
    %v358 = vpop.xlane.xlu0 %357
    %v359 = vsel %vm240, %v329, 0.0
    %360 = vadd.xlane.f32.xlu0 %v359
    %v361 = vpop.xlane.xlu0 %360
    %v362 = vsel %vm240, %v330, 0.0
    %363 = vadd.xlane.f32.xlu0 %v362
    %v364 = vpop.xlane.xlu0 %363
    %v365 = vsel %vm240, %v331, 0.0
    %366 = vadd.xlane.f32.xlu0 %v365
    %v367 = vpop.xlane.xlu0 %366
    %v368 = vsel %vm240, %v332, 0.0
    %369 = vadd.xlane.f32.xlu0 %v368
    %v370 = vpop.xlane.xlu0 %369
    %v371 = vsel %vm240, %v333, 0.0
    %372 = vadd.xlane.f32.xlu0 %v371
    %v373 = vpop.xlane.xlu0 %372
    %v374 = vsel %vm240, %v334, 0.0
    %375 = vadd.xlane.f32.xlu0 %v374
    %v376 = vpop.xlane.xlu0 %375
    %v377 = vsel %vm240, %v335, 0.0
    %378 = vadd.xlane.f32.xlu0 %v377
    %v379 = vpop.xlane.xlu0 %378
    %v380 = vsel %vm240, %v336, 0.0
    %381 = vadd.xlane.f32.xlu0 %v380
    %v382 = vpop.xlane.xlu0 %381
    %v383 = vsel %vm240, %v337, 0.0
    %384 = vadd.xlane.f32.xlu0 %v383
    %v385 = vpop.xlane.xlu0 %384
    %v386 = vmul.f32 %v340, %v289
    %v387 = vmul.f32 %v343, %v289
    %v388 = vmul.f32 %v346, %v289
    %v389 = vmul.f32 %v349, %v289
    %v390 = vmul.f32 %v352, %v289
    %v391 = vmul.f32 %v355, %v289
    %v392 = vmul.f32 %v358, %v289
    %v393 = vmul.f32 %v361, %v289
    %v394 = vmul.f32 %v364, %v289
    %v395 = vmul.f32 %v367, %v289
    %v396 = vmul.f32 %v370, %v289
    %v397 = vmul.f32 %v373, %v289
    %v398 = vmul.f32 %v376, %v289
    %v399 = vmul.f32 %v379, %v289
    %v400 = vmul.f32 %v382, %v289
    %v401 = vmul.f32 %v385, %v289
    %v402 = vadd.f32 %v386, 1e-05
    %v403 = vadd.f32 %v387, 1e-05
    %v404 = vadd.f32 %v388, 1e-05
    %v405 = vadd.f32 %v389, 1e-05
    %v406 = vadd.f32 %v390, 1e-05
    %v407 = vadd.f32 %v391, 1e-05
    %v408 = vadd.f32 %v392, 1e-05
    %v409 = vadd.f32 %v393, 1e-05
    %v410 = vadd.f32 %v394, 1e-05
    %v411 = vadd.f32 %v395, 1e-05
    %v412 = vadd.f32 %v396, 1e-05
    %v413 = vadd.f32 %v397, 1e-05
    %v414 = vadd.f32 %v398, 1e-05
    %v415 = vadd.f32 %v399, 1e-05
    %v416 = vadd.f32 %v400, 1e-05
    %v417 = vadd.f32 %v401, 1e-05
    %v418 = vrsqrt.pop %v402
    %v419 = vrsqrt.pop %v403
    %v420 = vrsqrt.pop %v404
    %v421 = vrsqrt.pop %v405
    %v422 = vrsqrt.pop %v406
    %v423 = vrsqrt.pop %v407
    %v424 = vrsqrt.pop %v408
    %v425 = vrsqrt.pop %v409
    %v426 = vrsqrt.pop %v410
    %v427 = vrsqrt.pop %v411
    %v428 = vrsqrt.pop %v412
    %v429 = vrsqrt.pop %v413
    %v430 = vrsqrt.pop %v414
    %v431 = vrsqrt.pop %v415
    %v432 = vrsqrt.pop %v416
    %v433 = vrsqrt.pop %v417
    %v434 = vmul.f32 %v306, %v418
    %v435 = vmul.f32 %v307, %v419
    %v436 = vmul.f32 %v308, %v420
    %v437 = vmul.f32 %v309, %v421
    %v438 = vmul.f32 %v310, %v422
    %v439 = vmul.f32 %v311, %v423
    %v440 = vmul.f32 %v312, %v424
    %v441 = vmul.f32 %v313, %v425
    %v442 = vmul.f32 %v314, %v426
    %v443 = vmul.f32 %v315, %v427
    %v444 = vmul.f32 %v316, %v428
    %v445 = vmul.f32 %v317, %v429
    %v446 = vmul.f32 %v318, %v430
    %v447 = vmul.f32 %v319, %v431
    %v448 = vmul.f32 %v320, %v432
    %v449 = vmul.f32 %v321, %v433
    %v450 = vld [vmem:[%s3] sm:$0xff]
    %v451 = vld [vmem:[%s3 + $0x8] sm:$0xff]
    %v452 = vld [vmem:[%s3 + $0x10] sm:$0xff]
    %v453 = vld [vmem:[%s3 + $0x18] sm:$0xff]
    %v454 = vld [vmem:[%s4] sm:$0x1]
    %v456 = vlaneseq
    %v457 = vshrl.u32 %v456, 7
    %v458 = vsub.s32 0, %v457
    %v459 = vrot.slane %v454, %v458
    %v462 = vsel %vm240, %v434, 0
    %v465 = vsel %vm240, %v435, 0
    %v468 = vsel %vm240, %v436, 0
    %v471 = vsel %vm240, %v437, 0
    %v474 = vsel %vm240, %v438, 0
    %v477 = vsel %vm240, %v439, 0
    %v480 = vsel %vm240, %v440, 0
    %v483 = vsel %vm240, %v441, 0
    %v486 = vsel %vm240, %v442, 0
    %v489 = vsel %vm240, %v443, 0
    %v492 = vsel %vm240, %v444, 0
    %v495 = vsel %vm240, %v445, 0
    %v498 = vsel %vm240, %v446, 0
    %v501 = vsel %vm240, %v447, 0
    %v504 = vsel %vm240, %v448, 0
    %v507 = vsel %vm240, %v449, 0
    %509 = vmatprep.subr.mxu0 0.0
    %510 = vmatpush1.msra.mxu0 0.0
    %511 = vmatprep.subr.mxu0 0.0
    %512 = vmatpush1.msra.mxu0 0.0
    %513 = vmatprep.subr.mxu0 0.0
    %514 = vmatpush1.msra.mxu0 0.0
    %515 = vmatprep.subr.mxu0 0.0
    %516 = vmatpush1.msra.mxu0 0.0
    %517 = vmatprep.subr.mxu0 0.0
    %518 = vmatpush1.msra.mxu0 0.0
    %519 = vmatprep.subr.mxu0 0.0
    %520 = vmatpush1.msra.mxu0 0.0
    %521 = vmatprep.subr.mxu0 0.0
    %522 = vmatpush1.msra.mxu0 0.0
    %523 = vmatprep.subr.mxu0 0.0
    %524 = vmatpush1.msra.mxu0 0.0
    %525 = vmatprep.subr.mxu0 0.0
    %526 = vmatpush1.msra.mxu0 0.0
    %527 = vmatprep.subr.mxu0 0.0
    %528 = vmatpush1.msra.mxu0 0.0
    %529 = vmatprep.subr.mxu0 0.0
    %530 = vmatpush1.msra.mxu0 0.0
    %531 = vmatprep.subr.mxu0 0.0
    %532 = vmatpush1.msra.mxu0 0.0
    %533 = vmatprep.subr.mxu0 0.0
    %534 = vmatpush1.msra.mxu0 %v453
    %535 = vmatprep.subr.mxu0 0.0
    %536 = vmatpush1.msra.mxu0 %v452
    %537 = vmatprep.subr.mxu0 0.0
    %538 = vmatpush1.msra.mxu0 %v451
    %539 = vmatprep.subr.mxu0 0.0
    %540 = vmatpush1.msra.mxu0 %v450
    %541 = vmatprep.subr.mxu0 0.0
    %542 = vmatpush2.msra.mxu0 0.0
    %543 = vmatprep.subr.mxu0 0.0
    %544 = vmatpush2.msra.mxu0 0.0
    %545 = vmatprep.subr.mxu0 0.0
    %546 = vmatpush2.msra.mxu0 0.0
    %547 = vmatprep.subr.mxu0 0.0
    %548 = vmatpush2.msra.mxu0 0.0
    %549 = vmatprep.subr.mxu0 0.0
    %550 = vmatpush2.msra.mxu0 0.0
    %551 = vmatprep.subr.mxu0 0.0
    %552 = vmatpush2.msra.mxu0 0.0
    %553 = vmatprep.subr.mxu0 0.0
    %554 = vmatpush2.msra.mxu0 0.0
    %555 = vmatprep.subr.mxu0 0.0
    %556 = vmatpush2.msra.mxu0 0.0
    %557 = vmatprep.subr.mxu0 0.0
    %558 = vmatpush2.msra.mxu0 0.0
    %559 = vmatprep.subr.mxu0 0.0
    %560 = vmatpush2.msra.mxu0 0.0
    %561 = vmatprep.subr.mxu0 0.0
    %562 = vmatpush2.msra.mxu0 0.0
    %563 = vmatprep.subr.mxu0 0.0
    %564 = vmatpush2.msra.mxu0 0.0
    %565 = vmatprep.subr.mxu0 0.0
    %566 = vmatpush2.msra.mxu0 0.0
    %567 = vmatprep.subr.mxu0 0.0
    %568 = vmatpush2.msra.mxu0 0.0
    %569 = vmatprep.subr.mxu0 0.0
    %570 = vmatpush2.msra.mxu0 0.0
    %571 = vmatprep.subr.mxu0 0.0
    %572 = vmatpush2.msra.mxu0 0.0
    %573 = vmatprep.mubr.f32.mxu0 0.0
    %574 = vmatmul.mubr.f32.gmra.mxu0 %v462
    %v575 = vpop.f32.mrf.mxu0
    %v576 = vadd.f32 %v459, %v575
    %v577 = vpop.f32.mrf.mxu0
    %578 = vmatprep.mubr.f32.mxu0 0.0
    %579 = vmatmul.mubr.f32.gmra.mxu0 %v465
    %v580 = vpop.f32.mrf.mxu0
    %v581 = vadd.f32 %v459, %v580
    %v582 = vpop.f32.mrf.mxu0
    %583 = vmatprep.mubr.f32.mxu0 0.0
    %584 = vmatmul.mubr.f32.gmra.mxu0 %v468
    %v585 = vpop.f32.mrf.mxu0
    %v586 = vadd.f32 %v459, %v585
    %v587 = vpop.f32.mrf.mxu0
    %588 = vmatprep.mubr.f32.mxu0 0.0
    %589 = vmatmul.mubr.f32.gmra.mxu0 %v471
    %v590 = vpop.f32.mrf.mxu0
    %v591 = vadd.f32 %v459, %v590
    %v592 = vpop.f32.mrf.mxu0
    %593 = vmatprep.mubr.f32.mxu0 0.0
    %594 = vmatmul.mubr.f32.gmra.mxu0 %v474
    %v595 = vpop.f32.mrf.mxu0
    %v596 = vadd.f32 %v459, %v595
    %v597 = vpop.f32.mrf.mxu0
    %598 = vmatprep.mubr.f32.mxu0 0.0
    %599 = vmatmul.mubr.f32.gmra.mxu0 %v477
    %v600 = vpop.f32.mrf.mxu0
    %v601 = vadd.f32 %v459, %v600
    %v602 = vpop.f32.mrf.mxu0
    %603 = vmatprep.mubr.f32.mxu0 0.0
    %604 = vmatmul.mubr.f32.gmra.mxu0 %v480
    %v605 = vpop.f32.mrf.mxu0
    %v606 = vadd.f32 %v459, %v605
    %v607 = vpop.f32.mrf.mxu0
    %608 = vmatprep.mubr.f32.mxu0 0.0
    %609 = vmatmul.mubr.f32.gmra.mxu0 %v483
    %v610 = vpop.f32.mrf.mxu0
    %v611 = vadd.f32 %v459, %v610
    %v612 = vpop.f32.mrf.mxu0
    %613 = vmatprep.mubr.f32.mxu0 0.0
    %614 = vmatmul.mubr.f32.gmra.mxu0 %v486
    %v615 = vpop.f32.mrf.mxu0
    %v616 = vadd.f32 %v459, %v615
    %v617 = vpop.f32.mrf.mxu0
    %618 = vmatprep.mubr.f32.mxu0 0.0
    %619 = vmatmul.mubr.f32.gmra.mxu0 %v489
    %v620 = vpop.f32.mrf.mxu0
    %v621 = vadd.f32 %v459, %v620
    %v622 = vpop.f32.mrf.mxu0
    %623 = vmatprep.mubr.f32.mxu0 0.0
    %624 = vmatmul.mubr.f32.gmra.mxu0 %v492
    %v625 = vpop.f32.mrf.mxu0
    %v626 = vadd.f32 %v459, %v625
    %v627 = vpop.f32.mrf.mxu0
    %628 = vmatprep.mubr.f32.mxu0 0.0
    %629 = vmatmul.mubr.f32.gmra.mxu0 %v495
    %v630 = vpop.f32.mrf.mxu0
    %v631 = vadd.f32 %v459, %v630
    %v632 = vpop.f32.mrf.mxu0
    %633 = vmatprep.mubr.f32.mxu0 0.0
    %634 = vmatmul.mubr.f32.gmra.mxu0 %v498
    %v635 = vpop.f32.mrf.mxu0
    %v636 = vadd.f32 %v459, %v635
    %v637 = vpop.f32.mrf.mxu0
    %638 = vmatprep.mubr.f32.mxu0 0.0
    %639 = vmatmul.mubr.f32.gmra.mxu0 %v501
    %v640 = vpop.f32.mrf.mxu0
    %v641 = vadd.f32 %v459, %v640
    %v642 = vpop.f32.mrf.mxu0
    %643 = vmatprep.mubr.f32.mxu0 0.0
    %644 = vmatmul.mubr.f32.gmra.mxu0 %v504
    %v645 = vpop.f32.mrf.mxu0
    %v646 = vadd.f32 %v459, %v645
    %v647 = vpop.f32.mrf.mxu0
    %648 = vmatprep.mubr.f32.mxu0 0.0
    %649 = vmatmul.mubr.f32.gmra.mxu0 %v507
    %v650 = vpop.f32.mrf.mxu0
    %v651 = vadd.f32 %v459, %v650
    %v652 = vpop.f32.mrf.mxu0
    %653 = vdwg.mxu0
    %654 = vst [vmem:[#allocation2] sm:$0xff] %v576
    %655 = vst [vmem:[#allocation2 + $0x8] sm:$0xff] %v581
    %656 = vst [vmem:[#allocation2 + $0x10] sm:$0xff] %v586
    %657 = vst [vmem:[#allocation2 + $0x18] sm:$0xff] %v591
    %658 = vst [vmem:[#allocation2 + $0x20] sm:$0xff] %v596
    %659 = vst [vmem:[#allocation2 + $0x28] sm:$0xff] %v601
    %660 = vst [vmem:[#allocation2 + $0x30] sm:$0xff] %v606
    %661 = vst [vmem:[#allocation2 + $0x38] sm:$0xff] %v611
    %662 = vst [vmem:[#allocation2 + $0x40] sm:$0xff] %v616
    %663 = vst [vmem:[#allocation2 + $0x48] sm:$0xff] %v621
    %664 = vst [vmem:[#allocation2 + $0x50] sm:$0xff] %v626
    %665 = vst [vmem:[#allocation2 + $0x58] sm:$0xff] %v631
    %666 = vst [vmem:[#allocation2 + $0x60] sm:$0xff] %v636
    %667 = vst [vmem:[#allocation2 + $0x68] sm:$0xff] %v641
    %668 = vst [vmem:[#allocation2 + $0x70] sm:$0xff] %v646
    %669 = vst [vmem:[#allocation2 + $0x78] sm:$0xff] %v651
    // Predicated region
    $region22: #{tpu_custom_call.1} parent=1 // pred_check
      _
    $region23: #{tpu_custom_call.1} parent=1 // pred_check_branch
      %671 = sbr.rel (0) target = $region25
    $region24: #{tpu_custom_call.1} parent=1 // pred_region
      %s673 = ssub.s32 2048, 2048
      %674 = vsyncadd [#allocation3], %s673
      %s675 = sshll.u32 [#allocation2], 4
      %s676 = int_to_ptr.vmem [resolvable:$true] %s675
      %681 = dma.vmem_to_hbm [thread:$0]  %s676, 2048, %s5, [#allocation3], 128, 128, 8
    $region25: #{tpu_custom_call.1} parent=1 // pred_fallthru
      _
    // Predicated region
    $region26: #{tpu_custom_call.1} parent=1 // pred_check
      _
    $region27: #{tpu_custom_call.1} parent=1 // pred_check_branch
      %683 = sbr.rel (0) target = $region29
    $region28: #{tpu_custom_call.1} parent=1 // pred_region
      %684 = dma.done [#allocation3], 2048
    $region29: #{tpu_custom_call.1} parent=1 // pred_fallthru
      _
    %685 = vsyncpa [#allocation3], 1

</llo_original>
